<compile_context>
chip_gen: v7x
topology: tpu7x:2x2x1
jax: 0.10.0
libtpu: 0.0.40
codegen_flags: <defaults>
</compile_context>

<pallas_src>
import math

import jax
import jax.numpy as jnp
from jax.experimental import pallas as pl
from jax.experimental.pallas import tpu as pltpu

_LANE = 128
_SUBLANE = 8
# ~2 MiB per block: with double-buffered input + output this is ~8 MiB of VMEM.
_TARGET_BLOCK_BYTES = 2 * 1024 * 1024
# Cap on the packed lane width (bounds the resident bias tile / vreg pressure).
_MAX_PACKED_LANES = 4096


def _add_broadcast_kernel(x_ref, b_ref, o_ref):
    # Pure VPU broadcast-add; works for both (TR, L)+(1, L) and
    # (1, C, THW)+(1, C, 1) / (1, TC, HW)+(1, TC, 1) block shapes.
    o_ref[...] = x_ref[...] + b_ref[...]


def _pick_row_tile(rows, row_bytes):
    """Row-tile: full rows if tiny, else a multiple of 8 targeting ~2 MiB."""
    if rows <= _SUBLANE:
        return rows
    tr = min(rows, max(1, _TARGET_BLOCK_BYTES // max(row_bytes, 1)))
    return max(_SUBLANE, (tr // _SUBLANE) * _SUBLANE)


def _add_row_bias(x2, bias_row):
    """x2: (B, W), bias_row: (1, W) -> x2 + bias_row (broadcast over rows)."""
    B, W = x2.shape
    itemsize = x2.dtype.itemsize
    total = B * W
    nbytes = total * itemsize

    # Lane-dense repack: (B, W) -> (R, L) with L a multiple of both W and 128,
    # so the tiled bias pattern repeats exactly and every store is a full-lane vst.
    base = (W * _LANE) // math.gcd(W, _LANE)  # lcm(W, 128)
    can_pack = (
        W % _LANE != 0
        and total % base == 0
        and base * itemsize <= _TARGET_BLOCK_BYTES
    )
    if can_pack:
        L = base
        while (L * 2) <= _MAX_PACKED_LANES and total % (L * 2) == 0:
            L *= 2
        R = total // L
        x_packed = x2.reshape(R, L)                      # glue reshape in plain JAX
        bias_packed = jnp.tile(bias_row, (1, L // W))    # (1, L)
        tr = _pick_row_tile(R, L * itemsize)

        out = pl.pallas_call(
            _add_broadcast_kernel,
            out_shape=jax.ShapeDtypeStruct((R, L), x2.dtype),
            grid_spec=pltpu.PrefetchScalarGridSpec(
                num_scalar_prefetch=0,
                grid=(pl.cdiv(R, tr),),
                in_specs=[
                    pl.BlockSpec((tr, L), lambda i: (i, 0)),
                    pl.BlockSpec((1, L), lambda i: (0, 0)),  # constant -> stays resident
                ],
                out_specs=pl.BlockSpec((tr, L), lambda i: (i, 0)),
            ),
            compiler_params=pltpu.CompilerParams(dimension_semantics=("parallel",)),
            cost_estimate=pl.CostEstimate(
                flops=total, transcendentals=0,
                bytes_accessed=2 * nbytes + L * itemsize),
        )(x_packed, bias_packed)
        return out.reshape(B, W)

    # Fallback: tile rows, keep the full-W lane axis (already dense if W % 128 == 0,
    # masked edge lanes otherwise — unavoidable without repacking).
    tb = _pick_row_tile(B, W * itemsize)
    return pl.pallas_call(
        _add_broadcast_kernel,
        out_shape=jax.ShapeDtypeStruct((B, W), x2.dtype),
        grid_spec=pltpu.PrefetchScalarGridSpec(
            num_scalar_prefetch=0,
            grid=(pl.cdiv(B, tb),),
            in_specs=[
                pl.BlockSpec((tb, W), lambda i: (i, 0)),
                pl.BlockSpec((1, W), lambda i: (0, 0)),
            ],
            out_specs=pl.BlockSpec((tb, W), lambda i: (i, 0)),
        ),
        compiler_params=pltpu.CompilerParams(dimension_semantics=("parallel",)),
        cost_estimate=pl.CostEstimate(
            flops=total, transcendentals=0,
            bytes_accessed=2 * nbytes + W * itemsize),
    )(x2, bias_row)


def _add_bias_4d(x, bias_vec):
    """x: (N, C, H, W) NCHW, bias_vec: (C,)."""
    N, C, H, W = x.shape
    HW = H * W
    itemsize = x.dtype.itemsize
    row_bytes = C * HW * itemsize
    nbytes = N * C * HW * itemsize

    # Small / moderate images: flatten each image to one row and reuse the
    # lane-dense row kernel.  The expanded bias (C*HW elements) is tiny and
    # stays resident; an 8-row block stays <= ~2 MiB by construction.
    if row_bytes * _SUBLANE <= _TARGET_BLOCK_BYTES:
        bias_row = jnp.repeat(bias_vec, HW).reshape(1, C * HW)
        out2 = _add_row_bias(x.reshape(N, C * HW), bias_row)
        return out2.reshape(N, C, H, W)

    # Large per-image footprint: per-channel broadcast kernel.
    x3 = x.reshape(N, C, HW)
    bias3 = bias_vec.reshape(1, C, 1)

    if HW >= 2 * _LANE:
        # Tile the lane-dense spatial axis in multiples of 128.
        thw = max(_LANE, ((_TARGET_BLOCK_BYTES // max(C * itemsize, 1)) // _LANE) * _LANE)
        thw = min(thw, (HW // _LANE) * _LANE)
        grid = (N, pl.cdiv(HW, thw))
        in_specs = [
            pl.BlockSpec((1, C, thw), lambda n, s: (n, 0, s)),
            pl.BlockSpec((1, C, 1), lambda n, s: (0, 0, 0)),  # resident bias
        ]
        out_specs = pl.BlockSpec((1, C, thw), lambda n, s: (n, 0, s))
        dims = ("parallel", "parallel")
    else:
        # Short spatial axis but huge C: tile channels in multiples of 8.
        tc = max(_SUBLANE,
                 (min(C, _TARGET_BLOCK_BYTES // max(HW * itemsize, 1)) // _SUBLANE) * _SUBLANE)
        grid = (N, pl.cdiv(C, tc))
        in_specs = [
            pl.BlockSpec((1, tc, HW), lambda n, c: (n, c, 0)),
            pl.BlockSpec((1, tc, 1), lambda n, c: (0, c, 0)),
        ]
        out_specs = pl.BlockSpec((1, tc, HW), lambda n, c: (n, c, 0))
        dims = ("parallel", "parallel")

    out3 = pl.pallas_call(
        _add_broadcast_kernel,
        out_shape=jax.ShapeDtypeStruct((N, C, HW), x.dtype),
        grid_spec=pltpu.PrefetchScalarGridSpec(
            num_scalar_prefetch=0,
            grid=grid,
            in_specs=in_specs,
            out_specs=out_specs,
        ),
        compiler_params=pltpu.CompilerParams(dimension_semantics=dims),
        cost_estimate=pl.CostEstimate(
            flops=N * C * HW, transcendentals=0,
            bytes_accessed=2 * nbytes + C * itemsize),
    )(x3, bias3)
    return out3.reshape(N, C, H, W)


def add_bias(x, bias_param):
    """Pallas equivalent of AddBias.forward.

    Args:
      x: (B, C) or (N, C, H, W) array.
      bias_param: (C, 1) array (matches the nn.Parameter shape bias.unsqueeze(1)).
    """
    C = bias_param.shape[0]
    bias_vec = bias_param.astype(x.dtype).reshape(C)

    if x.ndim == 2:
        assert x.shape[1] == C, f"channel mismatch: {x.shape[1]} vs {C}"
        return _add_row_bias(x, bias_vec.reshape(1, C))
    elif x.ndim == 4:
        assert x.shape[1] == C, f"channel mismatch: {x.shape[1]} vs {C}"
        return _add_bias_4d(x, bias_vec)
    else:
        raise ValueError(f"AddBias expects 2-D or 4-D input, got ndim={x.ndim}")


if __name__ == "__main__":
    key = jax.random.PRNGKey(0)
    k_bias, k_x4, k_x2, k_x2b, k_x2c = jax.random.split(key, 5)

    # Deterministic parameter init: bias vector (C,), stored as (C, 1) like
    # nn.Parameter(bias.unsqueeze(1)).
    C = 4
    bias_vec = jax.random.normal(k_bias, (C,), dtype=jnp.float32)
    bias_param = bias_vec.reshape(C, 1)

    # 4-D (NCHW) case -- small images -> flattened lane-dense row path.
    x4 = jax.random.normal(k_x4, (2, C, 16, 16), dtype=jnp.float32)
    y4 = jax.block_until_ready(add_bias(x4, bias_param))
    ref4 = x4 + bias_vec.reshape(1, C, 1, 1)
    assert jnp.allclose(y4, ref4, atol=1e-6), "4D mismatch"

    # 2-D case, tiny batch -> full-block fallback path.
    x2 = jax.random.normal(k_x2, (8, C), dtype=jnp.float32)
    y2 = jax.block_until_ready(add_bias(x2, bias_param))
    ref2 = x2 + bias_vec.reshape(1, C)
    assert jnp.allclose(y2, ref2, atol=1e-6), "2D mismatch (small batch)"

    # 2-D case, B*C divisible by 128 -> lane-dense packed path.
    x2b = jax.random.normal(k_x2b, (256, C), dtype=jnp.float32)
    y2b = jax.block_until_ready(add_bias(x2b, bias_param))
    ref2b = x2b + bias_vec.reshape(1, C)
    assert jnp.allclose(y2b, ref2b, atol=1e-6), "2D mismatch (packed)"

    # 2-D case, ragged batch -> tiled fallback with a partial edge block.
    x2c = jax.random.normal(k_x2c, (20, C), dtype=jnp.float32)
    y2c = jax.block_until_ready(add_bias(x2c, bias_param))
    ref2c = x2c + bias_vec.reshape(1, C)
    assert jnp.allclose(y2c, ref2c, atol=1e-6), "2D mismatch (ragged)"

    print("KERNEL_OK")
</pallas_src>

<mosaic_0001>
module attributes {stable_mosaic.version = 11 : i64} {
  func.func @_add_broadcast_kernel(%arg0: i32, %arg1: memref<2x1024xf32, #tpu.memory_space<vmem>>, %arg2: memref<1x1024xf32, #tpu.memory_space<vmem>>, %arg3: memref<2x1024xf32, #tpu.memory_space<vmem>>) attributes {dimension_semantics = [#tpu.dimension_semantics<parallel>], iteration_bounds = array<i64: 1>, scalar_prefetch = 0 : i64, scratch_operands = 0 : i64, tpu.core_type = #tpu.core_type<tc>, window_params = [{transform_indices = @transform_0, window_bounds = array<i64: 2, 1024>}, {pipeline_mode = #tpu.pipeline_mode<synchronous>, transform_indices = @transform_1, window_bounds = array<i64: 1, 1024>}, {transform_indices = @transform_2, window_bounds = array<i64: 2, 1024>}]} {
    %c0 = arith.constant 0 : index
    %c0_0 = arith.constant 0 : index
    %0 = vector.load %arg1[%c0, %c0_0] : memref<2x1024xf32, #tpu.memory_space<vmem>>, vector<2x1024xf32>
    %c0_1 = arith.constant 0 : index
    %c0_2 = arith.constant 0 : index
    %1 = vector.load %arg2[%c0_1, %c0_2] : memref<1x1024xf32, #tpu.memory_space<vmem>>, vector<1x1024xf32>
    %2 = vector.broadcast %1 : vector<1x1024xf32> to vector<2x1024xf32>
    %3 = arith.addf %0, %2 : vector<2x1024xf32>
    %c0_3 = arith.constant 0 : index
    %c0_4 = arith.constant 0 : index
    %4 = vector.load %arg3[%c0_3, %c0_4] : memref<2x1024xf32, #tpu.memory_space<vmem>>, vector<2x1024xf32>
    tpu.vector_store %arg3[%c0_3, %c0_4], %3 {strides = array<i32>} : memref<2x1024xf32, #tpu.memory_space<vmem>>, vector<2x1024xf32>,
    return
  }
  func.func @transform_0(%arg0: i32) -> (i32, i32) {
    %c0_i32 = arith.constant 0 : i32
    %c0_i32_0 = arith.constant 0 : i32
    return %arg0, %c0_i32 : i32, i32
  }
  func.func @transform_1(%arg0: i32) -> (i32, i32) {
    %c0_i32 = arith.constant 0 : i32
    %c0_i32_0 = arith.constant 0 : i32
    %c0_i32_1 = arith.constant 0 : i32
    return %c0_i32, %c0_i32_0 : i32, i32
  }
  func.func @transform_2(%arg0: i32) -> (i32, i32) {
    %c0_i32 = arith.constant 0 : i32
    %c0_i32_0 = arith.constant 0 : i32
    return %arg0, %c0_i32 : i32, i32
  }
}

</mosaic_0001>

<llo_original>
// kernel: tpu_custom_call.1
$region0: #{tpu_custom_call.1}
  #allocation0 [shape = 'u32[]', space=smem, size = 0x4, offset = 0x4, fixed_abs, tag = 'smem constant byte address 0x4 - core index']
  #allocation1 [shape = 'u32[144,128]{1,0:T(1,128)}', space=vmem, size = 0x12000, scoped, tag = 'internal scratch']
  %s0 = inlined_call_operand.hbm [shape: f32[2,1024], index: 0, kind: input, shape index: {}]
  %s1 = inlined_call_operand.hbm [shape: f32[1,1024], index: 1, kind: input, shape index: {}]
  %s2 = inlined_call_operand.hbm [shape: f32[2,1024], index: 2, kind: output, shape index: {}]
  %s3 = sld [smem:[#allocation0]]
  $region26: #{tpu_custom_call.1} parent=0
    _
  %s5 = ssub.s32 1, %s3
  %s6 = scalar_select 0, %s5, %s3
  $region1: #{tpu_custom_call.1} parent=0
    #allocation2 [shape = 'u8[8192]{0}', space=vmem, size = 0x2000, scoped, tag = 'input window, operand 0, single buffered']
    #allocation3 [shape = 's32[1]{0}', space=sflag, size = 0x4, scoped, tag = 'scoped memory for tpu_custom_call.1']
    #allocation4 [shape = 's32[1]{0}', space=sflag, size = 0x4, scoped, tag = 'scoped memory for tpu_custom_call.1']
    #allocation5 [shape = 'u8[4096]{0}', space=vmem, size = 0x1000, scoped, tag = 'input window, operand 1, single buffered']
    #allocation6 [shape = 's32[1]{0}', space=sflag, size = 0x4, scoped, tag = 'scoped memory for tpu_custom_call.1']
    #allocation7 [shape = 'u8[8192]{0}', space=vmem, size = 0x2000, scoped, tag = 'output window, operand 0, single buffered']
    %7 = vsyncpa [#allocation3], 0
    %8 = vsyncpa [#allocation6], 0
    %9 = vsyncpa [#allocation4], 0
    // Predicated region
    $region2: #{tpu_custom_call.1} parent=1 // pred_check
      _
    $region3: #{tpu_custom_call.1} parent=1 // pred_check_branch
      %11 = sbr.rel (0) target = $region5
    $region4: #{tpu_custom_call.1} parent=1 // pred_region
      %s13 = ssub.s32 256, 256
      %14 = vsyncadd [#allocation3], %s13
      %s16 = sshll.u32 [#allocation2], 4
      %s17 = int_to_ptr.vmem [resolvable:$true] %s16
      %19 = dma.hbm_to_vmem [thread:$0]  %s0, 256, %s17, [#allocation3]
    $region5: #{tpu_custom_call.1} parent=1 // pred_fallthru
      _
    // Predicated region
    $region6: #{tpu_custom_call.1} parent=1 // pred_check
      _
    $region7: #{tpu_custom_call.1} parent=1 // pred_check_branch
      %21 = sbr.rel (0) target = $region9
    $region8: #{tpu_custom_call.1} parent=1 // pred_region
      %s23 = ssub.s32 128, 128
      %24 = vsyncadd [#allocation6], %s23
      %s26 = sshll.u32 [#allocation5], 4
      %s27 = int_to_ptr.vmem [resolvable:$true] %s26
      %29 = dma.hbm_to_vmem [thread:$0]  %s1, 128, %s27, [#allocation6]
    $region9: #{tpu_custom_call.1} parent=1 // pred_fallthru
      _
    // Predicated region
    $region10: #{tpu_custom_call.1} parent=1 // pred_check
      _
    $region11: #{tpu_custom_call.1} parent=1 // pred_check_branch
      %31 = sbr.rel (0) target = $region13
    $region12: #{tpu_custom_call.1} parent=1 // pred_region
      %32 = dma.done [#allocation3], 256
    $region13: #{tpu_custom_call.1} parent=1 // pred_fallthru
      _
    // Predicated region
    $region14: #{tpu_custom_call.1} parent=1 // pred_check
      _
    $region15: #{tpu_custom_call.1} parent=1 // pred_check_branch
      %34 = sbr.rel (0) target = $region17
    $region16: #{tpu_custom_call.1} parent=1 // pred_region
      %35 = dma.done [#allocation6], 128
    $region17: #{tpu_custom_call.1} parent=1 // pred_fallthru
      _
    %v36 = vld [vmem:[#allocation2] sm:$0xff]
    %v37 = vld [vmem:[#allocation2 + $0x8] sm:$0xff]
    %v38 = vld [vmem:[#allocation5] sm:$0xff]
    %v40 = vlaneseq
    %v41 = vshrl.u32 %v40, 7
    %v42 = vsub.s32 0, %v41
    %v43 = vrot.slane %v38, %v42
    %v44 = vlaneseq
    %v45 = vshrl.u32 %v44, 7
    %v46 = vsub.s32 1, %v45
    %v47 = vrot.slane %v38, %v46
    %v48 = vlaneseq
    %v49 = vshrl.u32 %v48, 7
    %v50 = vsub.s32 2, %v49
    %v51 = vrot.slane %v38, %v50
    %v52 = vlaneseq
    %v53 = vshrl.u32 %v52, 7
    %v54 = vsub.s32 3, %v53
    %v55 = vrot.slane %v38, %v54
    %v56 = vlaneseq
    %v57 = vshrl.u32 %v56, 7
    %v58 = vsub.s32 4, %v57
    %v59 = vrot.slane %v38, %v58
    %v60 = vlaneseq
    %v61 = vshrl.u32 %v60, 7
    %v62 = vsub.s32 5, %v61
    %v63 = vrot.slane %v38, %v62
    %v64 = vlaneseq
    %v65 = vshrl.u32 %v64, 7
    %v66 = vsub.s32 6, %v65
    %v67 = vrot.slane %v38, %v66
    %v68 = vlaneseq
    %v69 = vshrl.u32 %v68, 7
    %v70 = vsub.s32 7, %v69
    %v71 = vrot.slane %v38, %v70
    %v72 = vcombine.low %v43, %v47
    %v73 = vcombine.low %v51, %v55
    %v75 = vunpack.c.l.s4 1983009808
    %v76 = vunpack.c.0.s8 %v75
    %v77 = vlaneseq
    %v78 = vshrl.u32 %v77, 7
    %v79 = vsub.s32 %v76, %v78
    %v80 = vrot.slane %v72, %v79
    %v82 = vunpack.c.l.s4 1983009808
    %v83 = vunpack.c.0.s8 %v82
    %v84 = vlaneseq
    %v85 = vshrl.u32 %v84, 7
    %v86 = vsub.s32 %v83, %v85
    %v87 = vrot.slane %v73, %v86
    %v88 = vcombine.low %v80, %v87
    %v89 = vcombine.low %v59, %v63
    %v90 = vcombine.low %v67, %v71
    %v92 = vunpack.c.l.s4 1983009808
    %v93 = vunpack.c.0.s8 %v92
    %v94 = vlaneseq
    %v95 = vshrl.u32 %v94, 7
    %v96 = vsub.s32 %v93, %v95
    %v97 = vrot.slane %v89, %v96
    %v99 = vunpack.c.l.s4 1983009808
    %v100 = vunpack.c.0.s8 %v99
    %v101 = vlaneseq
    %v102 = vshrl.u32 %v101, 7
    %v103 = vsub.s32 %v100, %v102
    %v104 = vrot.slane %v90, %v103
    %v105 = vcombine.low %v97, %v104
    %v108 = vadd.f32 %v36, %v88
    %v109 = vadd.f32 %v37, %v105
    %110 = vst [vmem:[#allocation7] sm:$0xff] %v108
    %111 = vst [vmem:[#allocation7 + $0x8] sm:$0xff] %v109
    // Predicated region
    $region18: #{tpu_custom_call.1} parent=1 // pred_check
      _
    $region19: #{tpu_custom_call.1} parent=1 // pred_check_branch
      %113 = sbr.rel (0) target = $region21
    $region20: #{tpu_custom_call.1} parent=1 // pred_region
      %s115 = ssub.s32 256, 256
      %116 = vsyncadd [#allocation4], %s115
      %s118 = sshll.u32 [#allocation7], 4
      %s119 = int_to_ptr.vmem [resolvable:$true] %s118
      %121 = dma.vmem_to_hbm [thread:$0]  %s119, 256, %s2, [#allocation4]
    $region21: #{tpu_custom_call.1} parent=1 // pred_fallthru
      _
    // Predicated region
    $region22: #{tpu_custom_call.1} parent=1 // pred_check
      _
    $region23: #{tpu_custom_call.1} parent=1 // pred_check_branch
      %123 = sbr.rel (0) target = $region25
    $region24: #{tpu_custom_call.1} parent=1 // pred_region
      %124 = dma.done [#allocation4], 256
    $region25: #{tpu_custom_call.1} parent=1 // pred_fallthru
      _
    %125 = vsyncpa [#allocation3], 1
    %126 = vsyncpa [#allocation6], 1
    %127 = vsyncpa [#allocation4], 1

</llo_original>
